<compile_context>
chip_gen: v7x
topology: tpu7x:2x2x1
jax: 0.10.0
libtpu: 0.0.40
codegen_flags: <defaults>
</compile_context>

<pallas_src>
import functools

import jax
import jax.numpy as jnp
from jax import lax
from jax.experimental import pallas as pl
from jax.experimental.pallas import tpu as pltpu


def _conv3x3_rowtile_kernel(x_ref, top_ref, bot_ref, w_ref, o_ref,
                            col_ref, acc_ref, *, W, compute_dtype):
    # x_ref   : (1, Cin, T*W)    row tile, spatial flattened on lanes (row-major, so
    #                            lanes [r*W, (r+1)*W) are row r of the tile)
    # top_ref : (1, 1, Cin, W)   row directly above the tile (zeros at image top)
    # bot_ref : (1, 1, Cin, W)   row directly below the tile (zeros at image bottom)
    # w_ref   : (3, Cout, 3*Cin) w3[kh, co, kw*Cin + ci] = w[co, ci, kh, kw]
    # o_ref   : (1, Cout, T*W)
    # col_ref : (9*Cin, T*W)     im2col staging, compute dtype (VMEM scratch)
    # acc_ref : (Cout, T*W)      f32 accumulator (VMEM scratch)
    cdt = compute_dtype
    Cin = x_ref.shape[1]
    St = x_ref.shape[2]                      # T*W

    x = x_ref[0].astype(cdt)                 # (Cin, T*W)
    top = top_ref[0, 0].astype(cdt)          # (Cin, W)
    bot = bot_ref[0, 0].astype(cdt)          # (Cin, W)

    # In-kernel column masks (hoisted out of the tap loop; no HBM constant input).
    c_flat = lax.broadcasted_iota(jnp.int32, (1, St), 1) % W
    left_m = (c_flat != 0).astype(cdt)       # zero lanes with c == 0     (kw = 0 taps)
    right_m = (c_flat != W - 1).astype(cdt)  # zero lanes with c == W-1   (kw = 2 taps)
    c_row = lax.broadcasted_iota(jnp.int32, (1, W), 1)
    left_mw = (c_row != 0).astype(cdt)
    right_mw = (c_row != W - 1).astype(cdt)

    def mask_kw(v, kw, narrow):
        if kw == 0:
            return v * (left_mw if narrow else left_m)
        if kw == 2:
            return v * (right_mw if narrow else right_m)
        return v

    for kh in range(3):
        # --- im2col for this kh: three lane-aligned full-width stores (+ tiny W-lane
        #     halo overwrites for kh=0 / kh=2). Row shifts via jnp.roll ride the XLU;
        #     wrap-around lanes are exactly the masked (kw-edge) lanes.
        for kw in range(3):
            t = kh * 3 + kw
            shift = (1 - kh) * W + (1 - kw)
            v = x if shift == 0 else jnp.roll(x, shift, axis=-1)
            col_ref[t * Cin:(t + 1) * Cin, :] = mask_kw(v, kw, False)
            if kh == 0:      # first output row of the tile reads the row above
                hv = top if kw == 1 else jnp.roll(top, 1 - kw, axis=-1)
                col_ref[t * Cin:(t + 1) * Cin, 0:W] = mask_kw(hv, kw, True)
            elif kh == 2:    # last output row of the tile reads the row below
                hv = bot if kw == 1 else jnp.roll(bot, 1 - kw, axis=-1)
                col_ref[t * Cin:(t + 1) * Cin, St - W:St] = mask_kw(hv, kw, True)

        # --- per-kh MXU dot (K = 3*Cin) accumulated in f32; splitting the contraction
        #     lets the scheduler overlap kh+1's col stores with this dot.
        part = jnp.dot(w_ref[kh], col_ref[kh * 3 * Cin:(kh + 1) * 3 * Cin, :],
                       preferred_element_type=jnp.float32)
        if kh == 0:
            acc_ref[...] = part
        else:
            acc_ref[...] = acc_ref[...] + part

    o_ref[0, :, :] = acc_ref[...].astype(o_ref.dtype)


def _choose_tile_rows(H, W, Cin, cbytes, col_budget_bytes):
    """Largest divisor T of H with T*W lane-aligned (or T==H) whose col buffer fits."""
    divisors = [d for d in range(1, H + 1) if H % d == 0]
    aligned = [d for d in divisors if (d * W) % 128 == 0 or d == H]
    fits = [d for d in aligned if 9 * Cin * d * W * cbytes <= col_budget_bytes]
    if fits:
        return max(fits)
    return min(aligned)   # fallback (H is always aligned); may exceed budget for tiny W


def conv3x3_pallas(x_nchw, w_oihw, *, compute_dtype=None, tile_rows=None,
                   col_budget_bytes=16 << 20):
    """3x3 / stride-1 / pad-1 / no-bias conv. x: (N,Cin,H,W), w: (Cout,Cin,3,3)."""
    N, Cin, H, W = x_nchw.shape
    Cout = w_oihw.shape[0]
    S = H * W
    cdt = jnp.dtype(compute_dtype) if compute_dtype is not None else jnp.dtype(x_nchw.dtype)
    cbytes = cdt.itemsize
    xbytes = jnp.dtype(x_nchw.dtype).itemsize

    if tile_rows is None:
        T = _choose_tile_rows(H, W, Cin, cbytes, col_budget_bytes)
    else:
        assert H % tile_rows == 0, "tile_rows must divide H"
        T = tile_rows
    nt = H // T
    St = T * W

    x_flat = x_nchw.reshape(N, Cin, S)                     # free (metadata) reshape

    # Per-tile halo rows (one above / one below), gathered once in the wrapper:
    # negligible HBM traffic (2 rows per tile). Image-boundary tiles get zeros here,
    # so the kernel has no boundary special-casing.
    rows = jnp.arange(nt)
    top_idx = jnp.maximum(rows * T - 1, 0)
    bot_idx = jnp.minimum(rows * T + T, H - 1)
    tvalid = (rows > 0).astype(x_nchw.dtype)[None, None, :, None]
    bvalid = (rows < nt - 1).astype(x_nchw.dtype)[None, None, :, None]
    top = jnp.transpose(x_nchw[:, :, top_idx, :] * tvalid, (0, 2, 1, 3))  # (N, nt, Cin, W)
    bot = jnp.transpose(x_nchw[:, :, bot_idx, :] * bvalid, (0, 2, 1, 3))  # (N, nt, Cin, W)

    # w3[kh, co, kw*Cin + ci] = w[co, ci, kh, kw]  (tiny, one-time)
    w3 = jnp.transpose(w_oihw, (2, 0, 3, 1)).reshape(3, Cout, 3 * Cin).astype(cdt)

    kernel = functools.partial(_conv3x3_rowtile_kernel, W=W, compute_dtype=cdt)

    # Scoped-VMEM budget from the actual tile sizes (with headroom).
    vmem_bytes = (9 * Cin * St * cbytes            # col
                  + Cout * St * 4                  # f32 acc
                  + 2 * Cin * St * xbytes          # double-buffered input tile
                  + 2 * Cout * St * xbytes         # double-buffered output tile
                  + 4 * Cin * W * xbytes           # double-buffered halo rows
                  + 2 * 9 * Cin * Cout * cbytes)   # weights
    vmem_limit = int(min(max(int(1.5 * vmem_bytes) + (1 << 20), 4 << 20), 64 << 20))

    y_flat = pl.pallas_call(
        kernel,
        out_shape=jax.ShapeDtypeStruct((N, Cout, S), x_nchw.dtype),
        grid_spec=pltpu.PrefetchScalarGridSpec(
            num_scalar_prefetch=0,
            grid=(N, nt),
            in_specs=[
                pl.BlockSpec((1, Cin, St), lambda n, i: (n, 0, i)),
                pl.BlockSpec((1, 1, Cin, W), lambda n, i: (n, i, 0, 0)),
                pl.BlockSpec((1, 1, Cin, W), lambda n, i: (n, i, 0, 0)),
                pl.BlockSpec((3, Cout, 3 * Cin), lambda n, i: (0, 0, 0)),
            ],
            out_specs=pl.BlockSpec((1, Cout, St), lambda n, i: (n, 0, i)),
            scratch_shapes=[
                pltpu.VMEM((9 * Cin, St), cdt),        # im2col staging
                pltpu.VMEM((Cout, St), jnp.float32),   # f32 accumulator
            ],
        ),
        compiler_params=pltpu.CompilerParams(
            dimension_semantics=("parallel", "parallel"),
            vmem_limit_bytes=vmem_limit),
    )(x_flat, top, bot, w3)

    return y_flat.reshape(N, Cout, H, W)                   # free reshape


def pixel_unshuffle(x_nchw, r=2):
    # Matches torch.nn.PixelUnshuffle: (N, C, H, W) -> (N, C*r*r, H//r, W//r)
    N, C, H, W = x_nchw.shape
    x = x_nchw.reshape(N, C, H // r, r, W // r, r)
    x = jnp.transpose(x, (0, 1, 3, 5, 2, 4))
    return x.reshape(N, C * r * r, H // r, W // r)


def downsample_forward(x_nchw, w_oihw, **kwargs):
    """x: (N, n_feat, H, W); w: (n_feat//2, n_feat, 3, 3)."""
    y = conv3x3_pallas(x_nchw, w_oihw, **kwargs)
    return pixel_unshuffle(y, r=2)


def downsample_reference(x_nchw, w_oihw):
    y = lax.conv_general_dilated(
        x_nchw, w_oihw,
        window_strides=(1, 1), padding=((1, 1), (1, 1)),
        dimension_numbers=("NCHW", "OIHW", "NCHW"))
    return pixel_unshuffle(y, r=2)


if __name__ == "__main__":
    key = jax.random.PRNGKey(0)
    n_feat = 4
    N, H, W = 2, 16, 16

    kx, kw_ = jax.random.split(key)
    x = jax.random.normal(kx, (N, n_feat, H, W), dtype=jnp.float32)
    # Conv2d(n_feat, n_feat//2, 3, bias=False) weight: (n_feat//2, n_feat, 3, 3)
    w = (jax.random.normal(kw_, (n_feat // 2, n_feat, 3, 3), dtype=jnp.float32)
         / jnp.sqrt(9.0 * n_feat))

    ref = jax.block_until_ready(downsample_reference(x, w))

    # 1) f32 operands, auto tile selection (whole image fits -> single tile).
    out_auto = jax.block_until_ready(downsample_forward(x, w))
    assert out_auto.shape == (N, 2 * n_feat, H // 2, W // 2), out_auto.shape
    assert jnp.allclose(out_auto, ref, atol=1e-4, rtol=1e-4), \
        float(jnp.max(jnp.abs(out_auto - ref)))

    # 2) f32 operands, forced row tiling (T=8 -> 2 tiles/image, exercises the halo path;
    #    T*W = 128 keeps every block lane-aligned).
    out_tiled = jax.block_until_ready(downsample_forward(x, w, tile_rows=8))
    assert jnp.allclose(out_tiled, ref, atol=1e-4, rtol=1e-4), \
        float(jnp.max(jnp.abs(out_tiled - ref)))

    # 3) bf16 MXU operands with f32 accumulation (looser tolerance).
    out_bf16 = jax.block_until_ready(
        downsample_forward(x, w, tile_rows=8, compute_dtype=jnp.bfloat16))
    assert jnp.allclose(out_bf16, ref, atol=6e-2, rtol=6e-2), \
        float(jnp.max(jnp.abs(out_bf16 - ref)))

    print("KERNEL_OK")
</pallas_src>

<mosaic_0001>
module attributes {stable_mosaic.version = 11 : i64} {
  func.func @_conv3x3_rowtile_kernel(%arg0: i32, %arg1: i32, %arg2: memref<1x4x256xf32, #tpu.memory_space<vmem>>, %arg3: memref<1x1x4x16xf32, #tpu.memory_space<vmem>>, %arg4: memref<1x1x4x16xf32, #tpu.memory_space<vmem>>, %arg5: memref<3x2x12xf32, #tpu.memory_space<vmem>>, %arg6: memref<1x2x256xf32, #tpu.memory_space<vmem>>, %arg7: memref<36x256xf32, #tpu.memory_space<vmem>>, %arg8: memref<2x256xf32, #tpu.memory_space<vmem>>) attributes {dimension_semantics = [#tpu.dimension_semantics<parallel>, #tpu.dimension_semantics<parallel>], iteration_bounds = array<i64: 2, 1>, scalar_prefetch = 0 : i64, scratch_operands = 2 : i64, tpu.core_type = #tpu.core_type<tc>, window_params = [{transform_indices = @transform_0, window_bounds = array<i64: 1, 4, 256>}, {transform_indices = @transform_1, window_bounds = array<i64: 1, 1, 4, 16>}, {transform_indices = @transform_2, window_bounds = array<i64: 1, 1, 4, 16>}, {pipeline_mode = #tpu.pipeline_mode<synchronous>, transform_indices = @transform_3, window_bounds = array<i64: 3, 2, 12>}, {transform_indices = @transform_4, window_bounds = array<i64: 1, 2, 256>}]} {
    %c0 = arith.constant 0 : index
    %c0_0 = arith.constant 0 : index
    %c0_1 = arith.constant 0 : index
    %0 = vector.load %arg2[%c0, %c0_0, %c0_1] : memref<1x4x256xf32, #tpu.memory_space<vmem>>, vector<1x4x256xf32>
    %1 = vector.shape_cast %0 : vector<1x4x256xf32> to vector<4x256xf32>
    %c0_2 = arith.constant 0 : index
    %c0_3 = arith.constant 0 : index
    %c0_4 = arith.constant 0 : index
    %c0_5 = arith.constant 0 : index
    %2 = vector.load %arg3[%c0_2, %c0_3, %c0_4, %c0_5] : memref<1x1x4x16xf32, #tpu.memory_space<vmem>>, vector<1x1x4x16xf32>
    %3 = vector.shape_cast %2 : vector<1x1x4x16xf32> to vector<4x16xf32>
    %c0_6 = arith.constant 0 : index
    %c0_7 = arith.constant 0 : index
    %c0_8 = arith.constant 0 : index
    %c0_9 = arith.constant 0 : index
    %4 = vector.load %arg4[%c0_6, %c0_7, %c0_8, %c0_9] : memref<1x1x4x16xf32, #tpu.memory_space<vmem>>, vector<1x1x4x16xf32>
    %5 = vector.shape_cast %4 : vector<1x1x4x16xf32> to vector<4x16xf32>
    %6 = tpu.iota {dimensions = array<i32: 1>} : vector<1x256xi32>
    %c16_i32 = arith.constant 16 : i32
    %c0_i32 = arith.constant 0 : i32
    %7 = arith.cmpi eq, %c16_i32, %c0_i32 : i32
    %c1_i32 = arith.constant 1 : i32
    %8 = arith.select %7, %c1_i32, %c16_i32 : i32
    %9 = vector.broadcast %8 : i32 to vector<1x256xi32>
    %10 = arith.remsi %6, %9 : vector<1x256xi32>
    %c0_i32_10 = arith.constant 0 : i32
    %11 = vector.broadcast %c0_i32_10 : i32 to vector<1x256xi32>
    %12 = arith.cmpi ne, %10, %11 : vector<1x256xi32>
    %c0_i32_11 = arith.constant 0 : i32
    %13 = vector.broadcast %c0_i32_11 : i32 to vector<1x256xi32>
    %14 = arith.cmpi slt, %10, %13 : vector<1x256xi32>
    %c0_i32_12 = arith.constant 0 : i32
    %15 = arith.cmpi slt, %8, %c0_i32_12 : i32
    %16 = vector.broadcast %15 : i1 to vector<1x256xi1>
    %17 = vector.broadcast %16 : vector<1x256xi1> to vector<1x256xi1>
    %18 = arith.xori %14, %17 : vector<1x256xi1>
    %19 = arith.andi %18, %12 : vector<1x256xi1>
    %20 = vector.broadcast %8 : i32 to vector<1x256xi32>
    %21 = arith.addi %10, %20 : vector<1x256xi32>
    %22 = arith.select %19, %21, %10 : vector<1x256xi1>, vector<1x256xi32>
    %c0_i32_13 = arith.constant 0 : i32
    %23 = vector.broadcast %c0_i32_13 : i32 to vector<1x256xi32>
    %24 = arith.cmpi ne, %22, %23 : vector<1x256xi32>
    %25 = arith.extui %24 : vector<1x256xi1> to vector<1x256xi32>
    %26 = arith.sitofp %25 : vector<1x256xi32> to vector<1x256xf32>
    %c15_i32 = arith.constant 15 : i32
    %27 = vector.broadcast %c15_i32 : i32 to vector<1x256xi32>
    %28 = arith.cmpi ne, %22, %27 : vector<1x256xi32>
    %29 = arith.extui %28 : vector<1x256xi1> to vector<1x256xi32>
    %30 = arith.sitofp %29 : vector<1x256xi32> to vector<1x256xf32>
    %31 = tpu.iota {dimensions = array<i32: 1>} : vector<1x16xi32>
    %c0_i32_14 = arith.constant 0 : i32
    %32 = vector.broadcast %c0_i32_14 : i32 to vector<1x16xi32>
    %33 = arith.cmpi ne, %31, %32 : vector<1x16xi32>
    %34 = arith.extui %33 : vector<1x16xi1> to vector<1x16xi32>
    %35 = arith.sitofp %34 : vector<1x16xi32> to vector<1x16xf32>
    %c15_i32_15 = arith.constant 15 : i32
    %36 = vector.broadcast %c15_i32_15 : i32 to vector<1x16xi32>
    %37 = arith.cmpi ne, %31, %36 : vector<1x16xi32>
    %38 = arith.extui %37 : vector<1x16xi1> to vector<1x16xi32>
    %39 = arith.sitofp %38 : vector<1x16xi32> to vector<1x16xf32>
    %40 = vector.extract_strided_slice %1 {offsets = [0, 239], sizes = [4, 17], strides = [1, 1]} : vector<4x256xf32> to vector<4x17xf32>
    %41 = vector.extract_strided_slice %1 {offsets = [0, 0], sizes = [4, 239], strides = [1, 1]} : vector<4x256xf32> to vector<4x239xf32>
    %42 = tpu.concatenate %40, %41 in 1 : vector<4x17xf32>, vector<4x239xf32> -> vector<4x256xf32>
    %43 = vector.broadcast %26 : vector<1x256xf32> to vector<4x256xf32>
    %44 = arith.mulf %42, %43 : vector<4x256xf32>
    %c0_16 = arith.constant 0 : index
    %c0_17 = arith.constant 0 : index
    %45 = vector.load %arg7[%c0_16, %c0_17] : memref<36x256xf32, #tpu.memory_space<vmem>>, vector<4x256xf32>
    tpu.vector_store %arg7[%c0_16, %c0_17], %44 {strides = array<i32>} : memref<36x256xf32, #tpu.memory_space<vmem>>, vector<4x256xf32>,
    %46 = vector.extract_strided_slice %3 {offsets = [0, 15], sizes = [4, 1], strides = [1, 1]} : vector<4x16xf32> to vector<4x1xf32>
    %47 = vector.extract_strided_slice %3 {offsets = [0, 0], sizes = [4, 15], strides = [1, 1]} : vector<4x16xf32> to vector<4x15xf32>
    %48 = tpu.concatenate %46, %47 in 1 : vector<4x1xf32>, vector<4x15xf32> -> vector<4x16xf32>
    %49 = vector.broadcast %35 : vector<1x16xf32> to vector<4x16xf32>
    %50 = arith.mulf %48, %49 : vector<4x16xf32>
    %c0_18 = arith.constant 0 : index
    %c0_19 = arith.constant 0 : index
    %51 = vector.load %arg7[%c0_18, %c0_19] : memref<36x256xf32, #tpu.memory_space<vmem>>, vector<4x16xf32>
    tpu.vector_store %arg7[%c0_18, %c0_19], %50 {strides = array<i32>} : memref<36x256xf32, #tpu.memory_space<vmem>>, vector<4x16xf32>,
    %52 = vector.extract_strided_slice %1 {offsets = [0, 240], sizes = [4, 16], strides = [1, 1]} : vector<4x256xf32> to vector<4x16xf32>
    %53 = vector.extract_strided_slice %1 {offsets = [0, 0], sizes = [4, 240], strides = [1, 1]} : vector<4x256xf32> to vector<4x240xf32>
    %54 = tpu.concatenate %52, %53 in 1 : vector<4x16xf32>, vector<4x240xf32> -> vector<4x256xf32>
    %c4 = arith.constant 4 : index
    %c0_20 = arith.constant 0 : index
    %55 = vector.load %arg7[%c4, %c0_20] : memref<36x256xf32, #tpu.memory_space<vmem>>, vector<4x256xf32>
    tpu.vector_store %arg7[%c4, %c0_20], %54 {strides = array<i32>} : memref<36x256xf32, #tpu.memory_space<vmem>>, vector<4x256xf32>,
    %c4_21 = arith.constant 4 : index
    %c0_22 = arith.constant 0 : index
    %56 = vector.load %arg7[%c4_21, %c0_22] : memref<36x256xf32, #tpu.memory_space<vmem>>, vector<4x16xf32>
    tpu.vector_store %arg7[%c4_21, %c0_22], %3 {strides = array<i32>} : memref<36x256xf32, #tpu.memory_space<vmem>>, vector<4x16xf32>,
    %57 = vector.extract_strided_slice %1 {offsets = [0, 241], sizes = [4, 15], strides = [1, 1]} : vector<4x256xf32> to vector<4x15xf32>
    %58 = vector.extract_strided_slice %1 {offsets = [0, 0], sizes = [4, 241], strides = [1, 1]} : vector<4x256xf32> to vector<4x241xf32>
    %59 = tpu.concatenate %57, %58 in 1 : vector<4x15xf32>, vector<4x241xf32> -> vector<4x256xf32>
    %60 = vector.broadcast %30 : vector<1x256xf32> to vector<4x256xf32>
    %61 = arith.mulf %59, %60 : vector<4x256xf32>
    %c8 = arith.constant 8 : index
    %c0_23 = arith.constant 0 : index
    %62 = vector.load %arg7[%c8, %c0_23] : memref<36x256xf32, #tpu.memory_space<vmem>>, vector<4x256xf32>
    tpu.vector_store %arg7[%c8, %c0_23], %61 {strides = array<i32>} : memref<36x256xf32, #tpu.memory_space<vmem>>, vector<4x256xf32>,
    %63 = vector.extract_strided_slice %3 {offsets = [0, 1], sizes = [4, 15], strides = [1, 1]} : vector<4x16xf32> to vector<4x15xf32>
    %64 = vector.extract_strided_slice %3 {offsets = [0, 0], sizes = [4, 1], strides = [1, 1]} : vector<4x16xf32> to vector<4x1xf32>
    %65 = tpu.concatenate %63, %64 in 1 : vector<4x15xf32>, vector<4x1xf32> -> vector<4x16xf32>
    %66 = vector.broadcast %39 : vector<1x16xf32> to vector<4x16xf32>
    %67 = arith.mulf %65, %66 : vector<4x16xf32>
    %c8_24 = arith.constant 8 : index
    %c0_25 = arith.constant 0 : index
    %68 = vector.load %arg7[%c8_24, %c0_25] : memref<36x256xf32, #tpu.memory_space<vmem>>, vector<4x16xf32>
    tpu.vector_store %arg7[%c8_24, %c0_25], %67 {strides = array<i32>} : memref<36x256xf32, #tpu.memory_space<vmem>>, vector<4x16xf32>,
    %c0_26 = arith.constant 0 : index
    %c0_27 = arith.constant 0 : index
    %c0_28 = arith.constant 0 : index
    %69 = vector.load %arg5[%c0_26, %c0_27, %c0_28] : memref<3x2x12xf32, #tpu.memory_space<vmem>>, vector<1x2x12xf32>
    %70 = vector.shape_cast %69 : vector<1x2x12xf32> to vector<2x12xf32>
    %c0_29 = arith.constant 0 : index
    %c0_30 = arith.constant 0 : index
    %71 = vector.load %arg7[%c0_29, %c0_30] : memref<36x256xf32, #tpu.memory_space<vmem>>, vector<12x256xf32>
    %cst = arith.constant dense<0.000000e+00> : vector<2x256xf32>
    %72 = tpu.matmul %70, %71, %cst {dimension_numbers = #tpu.dot_dimension_numbers<[1], [0], [0], [1], [0, 0, 1, 1], [], []>} : vector<2x12xf32>, vector<12x256xf32>, vector<2x256xf32> -> vector<2x256xf32>
    %c0_31 = arith.constant 0 : index
    %c0_32 = arith.constant 0 : index
    %73 = vector.load %arg8[%c0_31, %c0_32] : memref<2x256xf32, #tpu.memory_space<vmem>>, vector<2x256xf32>
    tpu.vector_store %arg8[%c0_31, %c0_32], %72 {strides = array<i32>} : memref<2x256xf32, #tpu.memory_space<vmem>>, vector<2x256xf32>,
    %74 = vector.extract_strided_slice %1 {offsets = [0, 255], sizes = [4, 1], strides = [1, 1]} : vector<4x256xf32> to vector<4x1xf32>
    %75 = vector.extract_strided_slice %1 {offsets = [0, 0], sizes = [4, 255], strides = [1, 1]} : vector<4x256xf32> to vector<4x255xf32>
    %76 = tpu.concatenate %74, %75 in 1 : vector<4x1xf32>, vector<4x255xf32> -> vector<4x256xf32>
    %77 = vector.broadcast %26 : vector<1x256xf32> to vector<4x256xf32>
    %78 = arith.mulf %76, %77 : vector<4x256xf32>
    %c12 = arith.constant 12 : index
    %c0_33 = arith.constant 0 : index
    %79 = vector.load %arg7[%c12, %c0_33] : memref<36x256xf32, #tpu.memory_space<vmem>>, vector<4x256xf32>
    tpu.vector_store %arg7[%c12, %c0_33], %78 {strides = array<i32>} : memref<36x256xf32, #tpu.memory_space<vmem>>, vector<4x256xf32>,
    %c16 = arith.constant 16 : index
    %c0_34 = arith.constant 0 : index
    %80 = vector.load %arg7[%c16, %c0_34] : memref<36x256xf32, #tpu.memory_space<vmem>>, vector<4x256xf32>
    tpu.vector_store %arg7[%c16, %c0_34], %1 {strides = array<i32>} : memref<36x256xf32, #tpu.memory_space<vmem>>, vector<4x256xf32>,
    %81 = vector.extract_strided_slice %1 {offsets = [0, 1], sizes = [4, 255], strides = [1, 1]} : vector<4x256xf32> to vector<4x255xf32>
    %82 = vector.extract_strided_slice %1 {offsets = [0, 0], sizes = [4, 1], strides = [1, 1]} : vector<4x256xf32> to vector<4x1xf32>
    %83 = tpu.concatenate %81, %82 in 1 : vector<4x255xf32>, vector<4x1xf32> -> vector<4x256xf32>
    %84 = vector.broadcast %30 : vector<1x256xf32> to vector<4x256xf32>
    %85 = arith.mulf %83, %84 : vector<4x256xf32>
    %c20 = arith.constant 20 : index
    %c0_35 = arith.constant 0 : index
    %86 = vector.load %arg7[%c20, %c0_35] : memref<36x256xf32, #tpu.memory_space<vmem>>, vector<4x256xf32>
    tpu.vector_store %arg7[%c20, %c0_35], %85 {strides = array<i32>} : memref<36x256xf32, #tpu.memory_space<vmem>>, vector<4x256xf32>,
    %c1 = arith.constant 1 : index
    %c0_36 = arith.constant 0 : index
    %c0_37 = arith.constant 0 : index
    %87 = vector.load %arg5[%c1, %c0_36, %c0_37] : memref<3x2x12xf32, #tpu.memory_space<vmem>>, vector<1x2x12xf32>
    %88 = vector.shape_cast %87 : vector<1x2x12xf32> to vector<2x12xf32>
    %c12_38 = arith.constant 12 : index
    %c0_39 = arith.constant 0 : index
    %89 = vector.load %arg7[%c12_38, %c0_39] : memref<36x256xf32, #tpu.memory_space<vmem>>, vector<12x256xf32>
    %cst_40 = arith.constant dense<0.000000e+00> : vector<2x256xf32>
    %90 = tpu.matmul %88, %89, %cst_40 {dimension_numbers = #tpu.dot_dimension_numbers<[1], [0], [0], [1], [0, 0, 1, 1], [], []>} : vector<2x12xf32>, vector<12x256xf32>, vector<2x256xf32> -> vector<2x256xf32>
    %c0_41 = arith.constant 0 : index
    %c0_42 = arith.constant 0 : index
    %91 = vector.load %arg8[%c0_41, %c0_42] : memref<2x256xf32, #tpu.memory_space<vmem>>, vector<2x256xf32>
    %92 = arith.addf %91, %90 : vector<2x256xf32>
    %c0_43 = arith.constant 0 : index
    %c0_44 = arith.constant 0 : index
    %93 = vector.load %arg8[%c0_43, %c0_44] : memref<2x256xf32, #tpu.memory_space<vmem>>, vector<2x256xf32>
    tpu.vector_store %arg8[%c0_43, %c0_44], %92 {strides = array<i32>} : memref<2x256xf32, #tpu.memory_space<vmem>>, vector<2x256xf32>,
    %94 = vector.extract_strided_slice %1 {offsets = [0, 15], sizes = [4, 241], strides = [1, 1]} : vector<4x256xf32> to vector<4x241xf32>
    %95 = vector.extract_strided_slice %1 {offsets = [0, 0], sizes = [4, 15], strides = [1, 1]} : vector<4x256xf32> to vector<4x15xf32>
    %96 = tpu.concatenate %94, %95 in 1 : vector<4x241xf32>, vector<4x15xf32> -> vector<4x256xf32>
    %97 = vector.broadcast %26 : vector<1x256xf32> to vector<4x256xf32>
    %98 = arith.mulf %96, %97 : vector<4x256xf32>
    %c24 = arith.constant 24 : index
    %c0_45 = arith.constant 0 : index
    %99 = vector.load %arg7[%c24, %c0_45] : memref<36x256xf32, #tpu.memory_space<vmem>>, vector<4x256xf32>
    tpu.vector_store %arg7[%c24, %c0_45], %98 {strides = array<i32>} : memref<36x256xf32, #tpu.memory_space<vmem>>, vector<4x256xf32>,
    %100 = vector.extract_strided_slice %5 {offsets = [0, 15], sizes = [4, 1], strides = [1, 1]} : vector<4x16xf32> to vector<4x1xf32>
    %101 = vector.extract_strided_slice %5 {offsets = [0, 0], sizes = [4, 15], strides = [1, 1]} : vector<4x16xf32> to vector<4x15xf32>
    %102 = tpu.concatenate %100, %101 in 1 : vector<4x1xf32>, vector<4x15xf32> -> vector<4x16xf32>
    %103 = vector.broadcast %35 : vector<1x16xf32> to vector<4x16xf32>
    %104 = arith.mulf %102, %103 : vector<4x16xf32>
    %c24_46 = arith.constant 24 : index
    %c240 = arith.constant 240 : index
    %105 = vector.load %arg7[%c24_46, %c240] : memref<36x256xf32, #tpu.memory_space<vmem>>, vector<4x16xf32>
    tpu.vector_store %arg7[%c24_46, %c240], %104 {strides = array<i32>} : memref<36x256xf32, #tpu.memory_space<vmem>>, vector<4x16xf32>,
    %106 = vector.extract_strided_slice %1 {offsets = [0, 16], sizes = [4, 240], strides = [1, 1]} : vector<4x256xf32> to vector<4x240xf32>
    %107 = vector.extract_strided_slice %1 {offsets = [0, 0], sizes = [4, 16], strides = [1, 1]} : vector<4x256xf32> to vector<4x16xf32>
    %108 = tpu.concatenate %106, %107 in 1 : vector<4x240xf32>, vector<4x16xf32> -> vector<4x256xf32>
    %c28 = arith.constant 28 : index
    %c0_47 = arith.constant 0 : index
    %109 = vector.load %arg7[%c28, %c0_47] : memref<36x256xf32, #tpu.memory_space<vmem>>, vector<4x256xf32>
    tpu.vector_store %arg7[%c28, %c0_47], %108 {strides = array<i32>} : memref<36x256xf32, #tpu.memory_space<vmem>>, vector<4x256xf32>,
    %c28_48 = arith.constant 28 : index
    %c240_49 = arith.constant 240 : index
    %110 = vector.load %arg7[%c28_48, %c240_49] : memref<36x256xf32, #tpu.memory_space<vmem>>, vector<4x16xf32>
    tpu.vector_store %arg7[%c28_48, %c240_49], %5 {strides = array<i32>} : memref<36x256xf32, #tpu.memory_space<vmem>>, vector<4x16xf32>,
    %111 = vector.extract_strided_slice %1 {offsets = [0, 17], sizes = [4, 239], strides = [1, 1]} : vector<4x256xf32> to vector<4x239xf32>
    %112 = vector.extract_strided_slice %1 {offsets = [0, 0], sizes = [4, 17], strides = [1, 1]} : vector<4x256xf32> to vector<4x17xf32>
    %113 = tpu.concatenate %111, %112 in 1 : vector<4x239xf32>, vector<4x17xf32> -> vector<4x256xf32>
    %114 = vector.broadcast %30 : vector<1x256xf32> to vector<4x256xf32>
    %115 = arith.mulf %113, %114 : vector<4x256xf32>
    %c32 = arith.constant 32 : index
    %c0_50 = arith.constant 0 : index
    %116 = vector.load %arg7[%c32, %c0_50] : memref<36x256xf32, #tpu.memory_space<vmem>>, vector<4x256xf32>
    tpu.vector_store %arg7[%c32, %c0_50], %115 {strides = array<i32>} : memref<36x256xf32, #tpu.memory_space<vmem>>, vector<4x256xf32>,
    %117 = vector.extract_strided_slice %5 {offsets = [0, 1], sizes = [4, 15], strides = [1, 1]} : vector<4x16xf32> to vector<4x15xf32>
    %118 = vector.extract_strided_slice %5 {offsets = [0, 0], sizes = [4, 1], strides = [1, 1]} : vector<4x16xf32> to vector<4x1xf32>
    %119 = tpu.concatenate %117, %118 in 1 : vector<4x15xf32>, vector<4x1xf32> -> vector<4x16xf32>
    %120 = vector.broadcast %39 : vector<1x16xf32> to vector<4x16xf32>
    %121 = arith.mulf %119, %120 : vector<4x16xf32>
    %c32_51 = arith.constant 32 : index
    %c240_52 = arith.constant 240 : index
    %122 = vector.load %arg7[%c32_51, %c240_52] : memref<36x256xf32, #tpu.memory_space<vmem>>, vector<4x16xf32>
    tpu.vector_store %arg7[%c32_51, %c240_52], %121 {strides = array<i32>} : memref<36x256xf32, #tpu.memory_space<vmem>>, vector<4x16xf32>,
    %c2 = arith.constant 2 : index
    %c0_53 = arith.constant 0 : index
    %c0_54 = arith.constant 0 : index
    %123 = vector.load %arg5[%c2, %c0_53, %c0_54] : memref<3x2x12xf32, #tpu.memory_space<vmem>>, vector<1x2x12xf32>
    %124 = vector.shape_cast %123 : vector<1x2x12xf32> to vector<2x12xf32>
    %c24_55 = arith.constant 24 : index
    %c0_56 = arith.constant 0 : index
    %125 = vector.load %arg7[%c24_55, %c0_56] : memref<36x256xf32, #tpu.memory_space<vmem>>, vector<12x256xf32>
    %cst_57 = arith.constant dense<0.000000e+00> : vector<2x256xf32>
    %126 = tpu.matmul %124, %125, %cst_57 {dimension_numbers = #tpu.dot_dimension_numbers<[1], [0], [0], [1], [0, 0, 1, 1], [], []>} : vector<2x12xf32>, vector<12x256xf32>, vector<2x256xf32> -> vector<2x256xf32>
    %c0_58 = arith.constant 0 : index
    %c0_59 = arith.constant 0 : index
    %127 = vector.load %arg8[%c0_58, %c0_59] : memref<2x256xf32, #tpu.memory_space<vmem>>, vector<2x256xf32>
    %128 = arith.addf %127, %126 : vector<2x256xf32>
    %c0_60 = arith.constant 0 : index
    %c0_61 = arith.constant 0 : index
    %129 = vector.load %arg8[%c0_60, %c0_61] : memref<2x256xf32, #tpu.memory_space<vmem>>, vector<2x256xf32>
    tpu.vector_store %arg8[%c0_60, %c0_61], %128 {strides = array<i32>} : memref<2x256xf32, #tpu.memory_space<vmem>>, vector<2x256xf32>,
    %c0_62 = arith.constant 0 : index
    %c0_63 = arith.constant 0 : index
    %130 = vector.load %arg8[%c0_62, %c0_63] : memref<2x256xf32, #tpu.memory_space<vmem>>, vector<2x256xf32>
    %c0_64 = arith.constant 0 : index
    %c0_65 = arith.constant 0 : index
    %c0_66 = arith.constant 0 : index
    %131 = vector.load %arg6[%c0_64, %c0_65, %c0_66] : memref<1x2x256xf32, #tpu.memory_space<vmem>>, vector<1x2x256xf32>
    %132 = vector.shape_cast %131 : vector<1x2x256xf32> to vector<2x256xf32>
    %133 = vector.shape_cast %130 : vector<2x256xf32> to vector<1x2x256xf32>
    tpu.vector_store %arg6[%c0_64, %c0_65, %c0_66], %133 {strides = array<i32>} : memref<1x2x256xf32, #tpu.memory_space<vmem>>, vector<1x2x256xf32>,
    return
  }
  func.func @transform_0(%arg0: i32, %arg1: i32) -> (i32, i32, i32) {
    %c0_i32 = arith.constant 0 : i32
    %c0_i32_0 = arith.constant 0 : i32
    return %arg0, %c0_i32, %arg1 : i32, i32, i32
  }
  func.func @transform_1(%arg0: i32, %arg1: i32) -> (i32, i32, i32, i32) {
    %c0_i32 = arith.constant 0 : i32
    %c0_i32_0 = arith.constant 0 : i32
    %c0_i32_1 = arith.constant 0 : i32
    return %arg0, %arg1, %c0_i32, %c0_i32_0 : i32, i32, i32, i32
  }
  func.func @transform_2(%arg0: i32, %arg1: i32) -> (i32, i32, i32, i32) {
    %c0_i32 = arith.constant 0 : i32
    %c0_i32_0 = arith.constant 0 : i32
    %c0_i32_1 = arith.constant 0 : i32
    return %arg0, %arg1, %c0_i32, %c0_i32_0 : i32, i32, i32, i32
  }
  func.func @transform_3(%arg0: i32, %arg1: i32) -> (i32, i32, i32) {
    %c0_i32 = arith.constant 0 : i32
    %c0_i32_0 = arith.constant 0 : i32
    %c0_i32_1 = arith.constant 0 : i32
    %c0_i32_2 = arith.constant 0 : i32
    return %c0_i32, %c0_i32_0, %c0_i32_1 : i32, i32, i32
  }
  func.func @transform_4(%arg0: i32, %arg1: i32) -> (i32, i32, i32) {
    %c0_i32 = arith.constant 0 : i32
    %c0_i32_0 = arith.constant 0 : i32
    return %arg0, %c0_i32, %arg1 : i32, i32, i32
  }
}

</mosaic_0001>

<llo_original>
// kernel: tpu_custom_call.1
$region0: #{tpu_custom_call.1}
  #allocation0 [shape = 'u32[]', space=smem, size = 0x4, offset = 0x4, fixed_abs, tag = 'smem constant byte address 0x4 - core index']
  #allocation1 [shape = 'u32[144,128]{1,0:T(1,128)}', space=vmem, size = 0x12000, scoped, tag = 'internal scratch']
  #allocation2 [shape = 'f32[36,256]{1,0:T(8,128)}', space=vmem, size = 0xa000, scoped, tag = 'scratch operand']
  #allocation3 [shape = 'f32[2,256]{1,0:T(2,128)}', space=vmem, size = 0x800, scoped, tag = 'scratch operand']
  %s0 = inlined_call_operand.hbm [shape: f32[2,4,256], index: 0, kind: input, shape index: {}]
  %s1 = inlined_call_operand.hbm [shape: f32[2,1,4,16], index: 1, kind: input, shape index: {}]
  %s2 = inlined_call_operand.hbm [shape: f32[2,1,4,16], index: 2, kind: input, shape index: {}]
  %s3 = inlined_call_operand.vmem [shape: f32[3,2,12], index: 3, kind: input, shape index: {}]
  %s4 = inlined_call_operand.hbm [shape: f32[2,2,256], index: 4, kind: output, shape index: {}]
  %s5 = sld [smem:[#allocation0]]
  $region61: #{tpu_custom_call.1} parent=0
    _
  %s7 = ssub.s32 1, %s5
  %s8 = scalar_select 0, %s7, %s5
  $region1: #{tpu_custom_call.1} parent=0
    #allocation4 [shape = 'u8[8192]{0}', space=vmem, size = 0x2000, scoped, tag = 'input window, operand 0']
    #allocation5 [shape = 's32[2]{0}', space=sflag, size = 0x8, scoped, tag = 'scoped memory for tpu_custom_call.1']
    #allocation6 [shape = 's32[2]{0}', space=sflag, size = 0x8, scoped, tag = 'scoped memory for tpu_custom_call.1']
    #allocation7 [shape = 'u8[4096]{0}', space=vmem, size = 0x1000, scoped, tag = 'input window, operand 1']
    #allocation8 [shape = 's32[2]{0}', space=sflag, size = 0x8, scoped, tag = 'scoped memory for tpu_custom_call.1']
    #allocation9 [shape = 'u8[4096]{0}', space=vmem, size = 0x1000, scoped, tag = 'input window, operand 2']
    #allocation10 [shape = 'u8[4096]{0}', space=vmem, size = 0x1000, scoped, tag = 'output window, operand 0']
    %9 = vsyncpa [#allocation5], 0
    %s10 = scalar_lea.sflag [#allocation5], 1
    %11 = vsyncpa %s10, 0
    %12 = vsyncpa [#allocation8], 0
    %s13 = scalar_lea.sflag [#allocation8], 1
    %14 = vsyncpa %s13, 0
    %15 = vsyncpa [#allocation6], 0
    %s16 = scalar_lea.sflag [#allocation6], 1
    %17 = vsyncpa %s16, 0
    loop: start=0, step=1, limit=4
    $region2: #{tpu_custom_call.1} parent=1 // loop_pre_header
      _
    $region3: #{tpu_custom_call.1} parent=1 // loop_header
      %s19 = sphi 0, %s23
      %p20 = scmp.ge.s32.totalorder %s19, 4
      %s26 = sphi 0, %s38
      %s27 = sphi 0, %s34
      %s28 = sphi 0, %s26
      %s29 = sphi 0, %s27
      %s30 = sphi 0, %s28
      %s31 = sphi 0, %s29
      %s43 = sphi 0, %s45
      %s46 = sphi 0, %s43
      %s47 = sphi 0, %s46
      %s63 = sphi 0, %s47
      %s71 = sphi 0, %s73
      %s74 = sphi 0, %s71
      %s75 = sphi 0, %s74
      %s91 = sphi 0, %s75
      %s99 = sphi 0, %s101
      %s102 = sphi 0, %s99
      %s103 = sphi 0, %s102
      %s119 = sphi 0, %s103
      %s123 = sphi 0, %s123
      %s125 = sphi 0, %s123
      %s126 = sphi 0, %s125
      %s140 = sphi 0, %s126
      %s148 = sphi 0, %s150
      %s151 = sphi 0, %s148
      %s152 = sphi 0, %s151
      %s168 = sphi 0, %s152
    $region4: #{tpu_custom_call.1} parent=1 // loop_header_branch
      %22 = sbr.rel (%p20) target = $region8
    $region5: #{tpu_custom_call.1} parent=1 // loop_body
      %s24 = ssub.s32 %s19, 1
      %s25 = ssub.s32 %s19, 2
      %s32 = sadd.s32 1, %s27
      %p33 = scmp.ge.s32.totalorder %s32, 1
      %s34 = scalar_select %p33, 0, %s32
      %s35 = sadd.s32 1, %s26
      %s36 = scalar_select %p33, %s35, %s26
      %p37 = scmp.ge.s32.totalorder %s36, 2
      %s38 = scalar_select %p37, 0, %s36
      %s39 = ssub.s32 %s26, %s38
      %s40 = ssub.s32 %s27, %s34
      %s41 = sor.u32 %s39, %s40
      %p42 = scmp.eq.s32.totalorder %s41, 0
      %s44 = sadd.s32 %s43, 1
      %s45 = scalar_select %p42, %s43, %s44
      %p48 = pneg %p42
      %p49 = scmp.eq.s32.totalorder %s19, 1
      %p50 = por %p48, %p49
      %p51 = scmp.ne.s32.totalorder %s43, %s46
      %p52 = scmp.eq.s32.totalorder %s19, 0
      %p53 = por %p51, %p52
      %p54 = scmp.ne.s32.totalorder %s43, %s46
      %p55 = scmp.eq.s32.totalorder %s24, 1
      %p56 = por %p54, %p55
      %p57 = scmp.ne.s32.totalorder %s46, %s47
      %p58 = scmp.eq.s32.totalorder %s24, 0
      %p59 = por %p57, %p58
      %p60 = scmp.ne.s32.totalorder %s46, %s47
      %p61 = scmp.eq.s32.totalorder %s25, 1
      %p62 = por %p60, %p61
      %p64 = scmp.ne.s32.totalorder %s47, %s63
      %p65 = scmp.eq.s32.totalorder %s25, 0
      %p66 = por %p64, %p65
      %s67 = ssub.s32 %s26, %s38
      %s68 = ssub.s32 %s27, %s34
      %s69 = sor.u32 %s67, %s68
      %p70 = scmp.eq.s32.totalorder %s69, 0
      %s72 = sadd.s32 %s71, 1
      %s73 = scalar_select %p70, %s71, %s72
      %p76 = pneg %p70
      %p77 = scmp.eq.s32.totalorder %s19, 1
      %p78 = por %p76, %p77
      %p79 = scmp.ne.s32.totalorder %s71, %s74
      %p80 = scmp.eq.s32.totalorder %s19, 0
      %p81 = por %p79, %p80
      %p82 = scmp.ne.s32.totalorder %s71, %s74
      %p83 = scmp.eq.s32.totalorder %s24, 1
      %p84 = por %p82, %p83
      %p85 = scmp.ne.s32.totalorder %s74, %s75
      %p86 = scmp.eq.s32.totalorder %s24, 0
      %p87 = por %p85, %p86
      %p88 = scmp.ne.s32.totalorder %s74, %s75
      %p89 = scmp.eq.s32.totalorder %s25, 1
      %p90 = por %p88, %p89
      %p92 = scmp.ne.s32.totalorder %s75, %s91
      %p93 = scmp.eq.s32.totalorder %s25, 0
      %p94 = por %p92, %p93
      %s95 = ssub.s32 %s26, %s38
      %s96 = ssub.s32 %s27, %s34
      %s97 = sor.u32 %s95, %s96
      %p98 = scmp.eq.s32.totalorder %s97, 0
      %s100 = sadd.s32 %s99, 1
      %s101 = scalar_select %p98, %s99, %s100
      %p104 = pneg %p98
      %p105 = scmp.eq.s32.totalorder %s19, 1
      %p106 = por %p104, %p105
      %p107 = scmp.ne.s32.totalorder %s99, %s102
      %p108 = scmp.eq.s32.totalorder %s19, 0
      %p109 = por %p107, %p108
      %p110 = scmp.ne.s32.totalorder %s99, %s102
      %p111 = scmp.eq.s32.totalorder %s24, 1
      %p112 = por %p110, %p111
      %p113 = scmp.ne.s32.totalorder %s102, %s103
      %p114 = scmp.eq.s32.totalorder %s24, 0
      %p115 = por %p113, %p114
      %p116 = scmp.ne.s32.totalorder %s102, %s103
      %p117 = scmp.eq.s32.totalorder %s25, 1
      %p118 = por %p116, %p117
      %p120 = scmp.ne.s32.totalorder %s103, %s119
      %p121 = scmp.eq.s32.totalorder %s25, 0
      %p122 = por %p120, %p121
      %s124 = sadd.s32 %s123, 1
      %p127 = scmp.eq.s32.totalorder %s19, 1
      %p128 = scmp.ne.s32.totalorder %s123, %s125
      %p129 = scmp.eq.s32.totalorder %s19, 0
      %p130 = por %p128, %p129
      %p131 = scmp.ne.s32.totalorder %s123, %s125
      %p132 = scmp.eq.s32.totalorder %s24, 1
      %p133 = por %p131, %p132
      %p134 = scmp.ne.s32.totalorder %s125, %s126
      %p135 = scmp.eq.s32.totalorder %s24, 0
      %p136 = por %p134, %p135
      %p137 = scmp.ne.s32.totalorder %s125, %s126
      %p138 = scmp.eq.s32.totalorder %s25, 1
      %p139 = por %p137, %p138
      %p141 = scmp.ne.s32.totalorder %s126, %s140
      %p142 = scmp.eq.s32.totalorder %s25, 0
      %p143 = por %p141, %p142
      %s144 = ssub.s32 %s26, %s38
      %s145 = ssub.s32 %s27, %s34
      %s146 = sor.u32 %s144, %s145
      %p147 = scmp.eq.s32.totalorder %s146, 0
      %s149 = sadd.s32 %s148, 1
      %s150 = scalar_select %p147, %s148, %s149
      %p153 = pneg %p147
      %p154 = scmp.eq.s32.totalorder %s19, 1
      %p155 = por %p153, %p154
      %p156 = scmp.ne.s32.totalorder %s148, %s151
      %p157 = scmp.eq.s32.totalorder %s19, 0
      %p158 = por %p156, %p157
      %p159 = scmp.ne.s32.totalorder %s148, %s151
      %p160 = scmp.eq.s32.totalorder %s24, 1
      %p161 = por %p159, %p160
      %p162 = scmp.ne.s32.totalorder %s151, %s152
      %p163 = scmp.eq.s32.totalorder %s24, 0
      %p164 = por %p162, %p163
      %p165 = scmp.ne.s32.totalorder %s151, %s152
      %p166 = scmp.eq.s32.totalorder %s25, 1
      %p167 = por %p165, %p166
      %p169 = scmp.ne.s32.totalorder %s152, %s168
      %p170 = scmp.eq.s32.totalorder %s25, 0
      %p171 = por %p169, %p170
      %p172 = scmp.le.s32.totalorder 1, %s19
      %p173 = scmp.lt.s32.totalorder %s19, 3
      %p174 = pnand %p172, %p173
      %p175 = pneg %p174
      // Predicated region
      $region9: #{tpu_custom_call.1} parent=5 // pred_check
        _
      $region10: #{tpu_custom_call.1} parent=5 // pred_check_branch
        %177 = sbr.rel (%p174) target = $region12
      $region11: #{tpu_custom_call.1} parent=5 // pred_region
        %s178 = ssub.s32 %s19, 1
        // Predicated region
        $region13: #{tpu_custom_call.1} parent=11 // pred_check
          %p179 = pneg %p136
        $region14: #{tpu_custom_call.1} parent=11 // pred_check_branch
          %181 = sbr.rel (%p179) target = $region16
        $region15: #{tpu_custom_call.1} parent=11 // pred_region
          _
        $region16: #{tpu_custom_call.1} parent=11 // pred_fallthru
          _
      $region12: #{tpu_custom_call.1} parent=5 // pred_fallthru
        _
      %p182 = scmp.lt.s32.totalorder %s19, 2
      // Predicated region
      $region17: #{tpu_custom_call.1} parent=5 // pred_check
        %p183 = pneg %p182
      $region18: #{tpu_custom_call.1} parent=5 // pred_check_branch
        %185 = sbr.rel (%p183) target = $region20
      $region19: #{tpu_custom_call.1} parent=5 // pred_region
        // Predicated region
        $region21: #{tpu_custom_call.1} parent=19 // pred_check
          %p186 = pneg %p53
        $region22: #{tpu_custom_call.1} parent=19 // pred_check_branch
          %188 = sbr.rel (%p186) target = $region24
        $region23: #{tpu_custom_call.1} parent=19 // pred_region
          %s189 = sand.u32 %s43, 1
          %s190 = scalar_lea.sflag [#allocation5], %s189
          %s191 = sand.u32 %s43, 1
          %s192 = smul.addr %s191, 8
          %s193 = scalar_lea.vmem [#allocation4], %s192
          %s194 = smul.u32 2, %s27
          %s196 = ssub.s32 128, 128
          %197 = vsyncadd %s190, %s196
          %s198 = smul.addr %s26, 2
          %s199 = sadd.s32 %s194, %s198
          %s200 = smul.addr %s199, 64
          %s201 = scalar_lea.hbm %s0, %s200
          %s203 = sshll.u32 %s193, 4
          %s204 = int_to_ptr.vmem [resolvable:$true] %s203
          %206 = dma.hbm_to_vmem [thread:$0]  %s201, 128, %s204, %s190
        $region24: #{tpu_custom_call.1} parent=19 // pred_fallthru
          _
        // Predicated region
        $region25: #{tpu_custom_call.1} parent=19 // pred_check
          %p207 = pneg %p81
        $region26: #{tpu_custom_call.1} parent=19 // pred_check_branch
          %209 = sbr.rel (%p207) target = $region28
        $region27: #{tpu_custom_call.1} parent=19 // pred_region
          %s210 = sand.u32 %s19, 1
          %s211 = scalar_lea.sflag [#allocation8], %s210
          %s212 = sand.u32 %s71, 1
          %s213 = smul.addr %s212, 4
          %s214 = scalar_lea.vmem [#allocation7], %s213
          %s216 = ssub.s32 64, 64
          %217 = vsyncadd %s211, %s216
          %s218 = sadd.s32 %s27, %s26
          %s219 = smul.addr %s218, 64
          %s220 = scalar_lea.hbm %s1, %s219
          %s222 = sshll.u32 %s214, 4
          %s223 = int_to_ptr.vmem [resolvable:$true] %s222
          %225 = dma.hbm_to_vmem [thread:$0]  %s220, 64, %s223, %s211
        $region28: #{tpu_custom_call.1} parent=19 // pred_fallthru
          _
        // Predicated region
        $region29: #{tpu_custom_call.1} parent=19 // pred_check
          %p226 = pneg %p109
        $region30: #{tpu_custom_call.1} parent=19 // pred_check_branch
          %228 = sbr.rel (%p226) target = $region32
        $region31: #{tpu_custom_call.1} parent=19 // pred_region
          %s229 = sand.u32 %s19, 1
          %s230 = scalar_lea.sflag [#allocation8], %s229
          %s231 = sand.u32 %s99, 1
          %s232 = smul.addr %s231, 4
          %s233 = scalar_lea.vmem [#allocation9], %s232
          %s235 = ssub.s32 64, 64
          %236 = vsyncadd %s230, %s235
          %s237 = sadd.s32 %s27, %s26
          %s238 = smul.addr %s237, 64
          %s239 = scalar_lea.hbm %s2, %s238
          %s241 = sshll.u32 %s233, 4
          %s242 = int_to_ptr.vmem [resolvable:$true] %s241
          %244 = dma.hbm_to_vmem [thread:$0]  %s239, 64, %s242, %s230
        $region32: #{tpu_custom_call.1} parent=19 // pred_fallthru
          _
      $region20: #{tpu_custom_call.1} parent=5 // pred_fallthru
        _
      %p245 = scmp.le.s32.totalorder 1, %s19
      %p246 = scmp.lt.s32.totalorder %s19, 3
      %p247 = pnand %p245, %p246
      %p248 = pneg %p247
      // Predicated region
      $region33: #{tpu_custom_call.1} parent=5 // pred_check
        _
      $region34: #{tpu_custom_call.1} parent=5 // pred_check_branch
        %250 = sbr.rel (%p247) target = $region36
      $region35: #{tpu_custom_call.1} parent=5 // pred_region
        %s251 = ssub.s32 %s19, 1
        %s252 = sand.u32 %s46, 1
        %s253 = scalar_lea.sflag [#allocation5], %s252
        %s254 = sand.u32 %s46, 1
        %s255 = smul.addr %s254, 8
        %s256 = scalar_lea.vmem [#allocation4], %s255
        // Predicated region
        $region37: #{tpu_custom_call.1} parent=35 // pred_check
          %p257 = pneg %p59
        $region38: #{tpu_custom_call.1} parent=35 // pred_check_branch
          %259 = sbr.rel (%p257) target = $region40
        $region39: #{tpu_custom_call.1} parent=35 // pred_region
          %260 = dma.done %s253, 128
        $region40: #{tpu_custom_call.1} parent=35 // pred_fallthru
          _
        %s261 = sand.u32 %s24, 1
        %s262 = scalar_lea.sflag [#allocation8], %s261
        %s263 = sand.u32 %s74, 1
        %s264 = smul.addr %s263, 4
        %s265 = scalar_lea.vmem [#allocation7], %s264
        // Predicated region
        $region41: #{tpu_custom_call.1} parent=35 // pred_check
          %p266 = pneg %p87
        $region42: #{tpu_custom_call.1} parent=35 // pred_check_branch
          %268 = sbr.rel (%p266) target = $region44
        $region43: #{tpu_custom_call.1} parent=35 // pred_region
          %269 = dma.done %s262, 64
        $region44: #{tpu_custom_call.1} parent=35 // pred_fallthru
          _
        %s270 = sand.u32 %s24, 1
        %s271 = scalar_lea.sflag [#allocation8], %s270
        %s272 = sand.u32 %s102, 1
        %s273 = smul.addr %s272, 4
        %s274 = scalar_lea.vmem [#allocation9], %s273
        // Predicated region
        $region45: #{tpu_custom_call.1} parent=35 // pred_check
          %p275 = pneg %p115
        $region46: #{tpu_custom_call.1} parent=35 // pred_check_branch
          %277 = sbr.rel (%p275) target = $region48
        $region47: #{tpu_custom_call.1} parent=35 // pred_region
          %278 = dma.done %s271, 64
        $region48: #{tpu_custom_call.1} parent=35 // pred_fallthru
          _
        %s279 = sand.u32 %s46, 1
        %s280 = scalar_lea.sflag [#allocation5], %s279
        %s281 = sand.u32 %s46, 1
        %s282 = smul.addr %s281, 8
        %s283 = scalar_lea.vmem [#allocation4], %s282
        %p284 = pneg %p59
        %p285 = pneg %p56
        %s286 = sand.u32 %s24, 1
        %s287 = scalar_lea.sflag [#allocation8], %s286
        %s288 = sand.u32 %s74, 1
        %s289 = smul.addr %s288, 4
        %s290 = scalar_lea.vmem [#allocation7], %s289
        %p291 = pneg %p87
        %p292 = pneg %p84
        %s293 = sand.u32 %s24, 1
        %s294 = scalar_lea.sflag [#allocation8], %s293
        %s295 = sand.u32 %s102, 1
        %s296 = smul.addr %s295, 4
        %s297 = scalar_lea.vmem [#allocation9], %s296
        %p298 = pneg %p115
        %p299 = pneg %p112
        %p300 = pneg %p136
        %p301 = pneg %p133
        %p302 = pneg %p164
        %p303 = pneg %p161
        %s304 = sand.u32 %s151, 1
        %s305 = scalar_lea.sflag [#allocation6], %s304
        %s306 = sand.u32 %s151, 1
        %s307 = smul.addr %s306, 4
        %s308 = scalar_lea.vmem [#allocation10], %s307
        %s309 = smul.u32 2, %s29
        %s310 = smul.u32 2, %s29
        %v311 = vld [vmem:[%s256] sm:$0xff]
        %v312 = vld [vmem:[%s265] sm:$0xf]
        %v313 = vld [vmem:[%s274] sm:$0xf]
        %v314 = vlaneseq
        %v315 = vand.u32 %v314, 127
        %v316 = vadd.s32 %v315, 128
        %vm317 = vcmp.lt.s32.totalorder %v315, 0
        %v318 = vsub.s32 0, %v315
        %v319 = vsel %vm317, %v318, %v315
        %v320 = vshrl.u32 %v319, 4
        %v321 = vand.u32 %v319, 15
        %v322 = vsub.s32 0, %v321
        %v323 = vsel %vm317, %v322, %v321
        %vm324 = vcmp.lt.s32.totalorder %v316, 0
        %v325 = vsub.s32 0, %v316
        %v326 = vsel %vm324, %v325, %v316
        %v327 = vshrl.u32 %v326, 4
        %v328 = vand.u32 %v326, 15
        %v329 = vsub.s32 0, %v328
        %v330 = vsel %vm324, %v329, %v328
        %vm331 = vcmp.ne.s32.totalorder %v323, 0
        %vm332 = vcmp.ne.s32.totalorder %v330, 0
        %vm333 = vcmp.lt.s32.totalorder %v323, 0
        %vm334 = vcmp.lt.s32.totalorder %v330, 0
        %vm335 = vmand %vm333, %vm331
        %vm336 = vmand %vm334, %vm332
        %v337 = vadd.s32 %v323, 16
        %v338 = vadd.s32 %v330, 16
        %v339 = vsel %vm335, %v337, %v323
        %v340 = vsel %vm336, %v338, %v330
        %vm341 = vcmp.ne.s32.totalorder %v339, 0
        %vm342 = vcmp.ne.s32.totalorder %v340, 0
        %v343 = vsel %vm341, 1, 0
        %v344 = vsel %vm342, 1, 0
        %v345 = vcvt.s32.f32 %v343
        %v346 = vcvt.s32.f32 %v344
        %vm347 = vcmp.ne.s32.totalorder %v339, 15
        %vm348 = vcmp.ne.s32.totalorder %v340, 15
        %v349 = vsel %vm347, 1, 0
        %v350 = vsel %vm348, 1, 0
        %v351 = vcvt.s32.f32 %v349
        %v352 = vcvt.s32.f32 %v350
        %vm353 = vcmp.ne.s32.totalorder %v315, 0
        %v354 = vsel %vm353, 1, 0
        %v355 = vcvt.s32.f32 %v354
        %vm356 = vcmp.ne.s32.totalorder %v315, 15
        %v357 = vsel %vm356, 1, 0
        %v358 = vcvt.s32.f32 %v357
        %v360 = vcombine.high %v311, %v311
        %361 = vrot.lane.b32.xlu0 %v360, 17
        %v362 = vpop.permute.xlu0 %361
        %364 = vrot.lane.b32.xlu0 %v311, 17
        %v365 = vpop.permute.xlu0 %364
        %vm366 = vcmask 138240
        %v367 = vsel %vm366, %v365, %v362
        %v370 = vsel %vm366, %v362, %v365
        %v371 = vmul.f32 %v370, %v345
        %v372 = vmul.f32 %v367, %v346
        %373 = vst [vmem:[#allocation2] sm:$0xf] %v371
        %374 = vst [vmem:[#allocation2 + $0x8] sm:$0xf] %v372
        %376 = vrot.lane.b32.xlu0 %v312, 113
        %v377 = vpop.permute.xlu0 %376
        %379 = vrot.lane.b32.xlu0 %v312, 1
        %v380 = vpop.permute.xlu0 %379
        %vm382 = vcmask 7168
        %v383 = vsel %vm382, %v377, %v380
        %v384 = vmul.f32 %v383, %v355
        %vm385 = vcmask 125952
        %386 = vst.msk [vmem:[#allocation2] sm:$0xf] %vm385, %v384
        %387 = vrot.lane.b32.xlu0 %v360, 16
        %v388 = vpop.permute.xlu0 %387
        %390 = vrot.lane.b32.xlu0 %v311, 16
        %v391 = vpop.permute.xlu0 %390
        %vm392 = vcmask 130048
        %v393 = vsel %vm392, %v391, %v388
        %v395 = vsel %vm392, %v388, %v391
        %v397 = vrot.slane %v395, 4
        %v398 = vrot.slane %v393, 4
        %401 = vst [vmem:[#allocation2] sm:$0xf0] %v397
        %402 = vst [vmem:[#allocation2 + $0x8] sm:$0xf0] %v398
        %v403 = vrot.slane %v312, 4
        %vm405 = vcmask 130052
        %406 = vst.msk [vmem:[#allocation2] sm:$0xf0] %vm405, %v403
        %407 = vrot.lane.b32.xlu0 %v360, 15
        %v408 = vpop.permute.xlu0 %407
        %410 = vrot.lane.b32.xlu0 %v311, 15
        %v411 = vpop.permute.xlu0 %410
        %vm412 = vcmask 121856
        %v413 = vsel %vm412, %v411, %v408
        %v416 = vsel %vm412, %v408, %v411
        %v417 = vmul.f32 %v416, %v351
        %v418 = vmul.f32 %v413, %v352
        %419 = vst [vmem:[#allocation2 + $0x10] sm:$0xf] %v417
        %420 = vst [vmem:[#allocation2 + $0x18] sm:$0xf] %v418
        %421 = vrot.lane.b32.xlu0 %v312, 127
        %v422 = vpop.permute.xlu0 %421
        %424 = vrot.lane.b32.xlu0 %v312, 15
        %v425 = vpop.permute.xlu0 %424
        %v427 = vsel %vm412, %v422, %v425
        %v428 = vmul.f32 %v427, %v358
        %429 = vst.msk [vmem:[#allocation2 + $0x10] sm:$0xf] %vm385, %v428
        %v430 = vld [vmem:[%s3] sm:$0x3]
        %v431 = vld [vmem:[#allocation2] sm:$0xff]
        %v432 = vld [vmem:[#allocation2 + $0x8] sm:$0xff]
        %v433 = vld [vmem:[#allocation2 + $0x10] sm:$0xf]
        %v434 = vld [vmem:[#allocation2 + $0x18] sm:$0xf]
        %vm435 = vcmask 97280
        %v437 = vsel %vm435, %v430, 0
        %vm439 = vcmask 1043456
        %v441 = vsel %vm439, %v433, 0
        %v444 = vsel %vm439, %v434, 0
        %446 = vmatprep.subr.mxu0 %v432
        %447 = vmatpush1.msra.mxu0 %v431
        %448 = vmatprep.subr.mxu0 %v444
        %449 = vmatpush1.msra.mxu0 %v441
        %450 = vmatprep.subr.mxu0 0.0
        %451 = vmatpush1.msra.mxu0 0.0
        %452 = vmatprep.subr.mxu0 0.0
        %453 = vmatpush1.msra.mxu0 0.0
        %454 = vmatprep.subr.mxu0 0.0
        %455 = vmatpush1.msra.mxu0 0.0
        %456 = vmatprep.subr.mxu0 0.0
        %457 = vmatpush1.msra.mxu0 0.0
        %458 = vmatprep.subr.mxu0 0.0
        %459 = vmatpush1.msra.mxu0 0.0
        %460 = vmatprep.subr.mxu0 0.0
        %461 = vmatpush1.msra.mxu0 0.0
        %462 = vmatprep.subr.mxu0 0.0
        %463 = vmatpush1.msra.mxu0 0.0
        %464 = vmatprep.subr.mxu0 0.0
        %465 = vmatpush1.msra.mxu0 0.0
        %466 = vmatprep.subr.mxu0 0.0
        %467 = vmatpush1.msra.mxu0 0.0
        %468 = vmatprep.subr.mxu0 0.0
        %469 = vmatpush1.msra.mxu0 0.0
        %470 = vmatprep.subr.mxu0 0.0
        %471 = vmatpush1.msra.mxu0 0.0
        %472 = vmatprep.subr.mxu0 0.0
        %473 = vmatpush1.msra.mxu0 0.0
        %474 = vmatprep.subr.mxu0 0.0
        %475 = vmatpush1.msra.mxu0 0.0
        %476 = vmatprep.subr.mxu0 0.0
        %477 = vmatpush1.msra.mxu0 0.0
        %478 = vmatprep.subr.mxu0 0.0
        %479 = vmatpush1.msra.mxu0 0.0
        %480 = vmatprep.subr.mxu0 0.0
        %481 = vmatpush1.msra.mxu0 0.0
        %482 = vmatprep.subr.mxu0 0.0
        %483 = vmatpush1.msra.mxu0 0.0
        %484 = vmatprep.subr.mxu0 0.0
        %485 = vmatpush1.msra.mxu0 0.0
        %486 = vmatprep.subr.mxu0 0.0
        %487 = vmatpush1.msra.mxu0 0.0
        %488 = vmatprep.subr.mxu0 0.0
        %489 = vmatpush1.msra.mxu0 0.0
        %490 = vmatprep.subr.mxu0 0.0
        %491 = vmatpush1.msra.mxu0 0.0
        %492 = vmatprep.subr.mxu0 0.0
        %493 = vmatpush1.msra.mxu0 0.0
        %494 = vmatprep.subr.mxu0 0.0
        %495 = vmatpush1.msra.mxu0 0.0
        %496 = vmatprep.subr.mxu0 0.0
        %497 = vmatpush1.msra.mxu0 0.0
        %498 = vmatprep.subr.mxu0 0.0
        %499 = vmatpush1.msra.mxu0 0.0
        %500 = vmatprep.subr.mxu0 0.0
        %501 = vmatpush1.msra.mxu0 0.0
        %502 = vmatprep.subr.mxu0 0.0
        %503 = vmatpush1.msra.mxu0 0.0
        %504 = vmatprep.subr.mxu0 0.0
        %505 = vmatpush1.msra.mxu0 0.0
        %506 = vmatprep.subr.mxu0 0.0
        %507 = vmatpush1.msra.mxu0 0.0
        %508 = vmatprep.subr.mxu0 0.0
        %509 = vmatpush1.msra.mxu0 0.0
        %510 = vmatprep.mubr.f32.mxu0 0.0
        %511 = vmatmul.mubr.f32.gmra.mrb[0].mxu0 %v437
        %v512 = vpop.f32.mrb[0].mxu0
        %v513 = vadd.f32 0.0, %v512
        %v514 = vpop.f32.mrb[0].mxu0
        %v515 = vadd.f32 0.0, %v514
        %516 = vdwg.mxu0
        %v519 = vcombine.low %v513, %v515
        %v521 = vunpack.c.l.s4 1983009808
        %v522 = vunpack.c.0.s8 %v521
        %v523 = vlaneseq
        %v524 = vshrl.u32 %v523, 7
        %v525 = vsub.s32 %v522, %v524
        %v526 = vrot.slane %v519, %v525
        %528 = vst [vmem:[#allocation3] sm:$0xf] %v526
        %529 = vrot.lane.b32.xlu0 %v360, 1
        %v530 = vpop.permute.xlu0 %529
        %532 = vrot.lane.b32.xlu0 %v311, 1
        %v533 = vpop.permute.xlu0 %532
        %v534 = vsel %vm382, %v533, %v530
        %v537 = vsel %vm382, %v530, %v533
        %v538 = vmul.f32 %v537, %v345
        %v539 = vmul.f32 %v534, %v346
        %v542 = vrot.slane %v538, 4
        %v543 = vrot.slane %v539, 4
        %546 = vst [vmem:[#allocation2 + $0x10] sm:$0xf0] %v542
        %547 = vst [vmem:[#allocation2 + $0x18] sm:$0xf0] %v543
        %549 = vst [vmem:[#allocation2 + $0x20] sm:$0xf] %v311
        %550 = vst [vmem:[#allocation2 + $0x28] sm:$0xf] %v360
        %551 = vrot.lane.b32.xlu0 %v311, 127
        %v552 = vpop.permute.xlu0 %551
        %553 = vrot.lane.b32.xlu0 %v360, 127
        %v554 = vpop.permute.xlu0 %553
        %vm555 = vcmask 1039360
        %v556 = vsel %vm555, %v552, %v554
        %v560 = vsel %vm555, %v554, %v552
        %v561 = vmul.f32 %v556, %v351
        %v562 = vmul.f32 %v560, %v352
        %v565 = vrot.slane %v561, 4
        %v566 = vrot.slane %v562, 4
        %569 = vst [vmem:[#allocation2 + $0x20] sm:$0xf0] %v565
        %570 = vst [vmem:[#allocation2 + $0x28] sm:$0xf0] %v566
        %s571 = scalar_lea.vmem %s3, 2
        %v572 = vld [vmem:[%s571] sm:$0x3]
        %v573 = vld [vmem:[#allocation2 + $0x10] sm:$0xf0]
        %v574 = vld [vmem:[#allocation2 + $0x18] sm:$0xf0]
        %v575 = vld [vmem:[#allocation2 + $0x20] sm:$0xff]
        %v576 = vld [vmem:[#allocation2 + $0x28] sm:$0xff]
        %v581 = vrot.slane %v573, 4
        %v582 = vrot.slane %v575, 4
        %v583 = vsel %vm439, %v581, %v582
        %v584 = vrot.slane %v574, 4
        %v585 = vrot.slane %v576, 4
        %v586 = vsel %vm439, %v584, %v585
        %v590 = vsel %vm435, %v572, 0
        %v592 = vsel %vm439, %v582, 0
        %v594 = vsel %vm439, %v585, 0
        %596 = vmatprep.subr.mxu0 %v586
        %597 = vmatpush1.msra.mxu0 %v583
        %598 = vmatprep.subr.mxu0 %v594
        %599 = vmatpush1.msra.mxu0 %v592
        %600 = vmatprep.subr.mxu0 0.0
        %601 = vmatpush1.msra.mxu0 0.0
        %602 = vmatprep.subr.mxu0 0.0
        %603 = vmatpush1.msra.mxu0 0.0
        %604 = vmatprep.subr.mxu0 0.0
        %605 = vmatpush1.msra.mxu0 0.0
        %606 = vmatprep.subr.mxu0 0.0
        %607 = vmatpush1.msra.mxu0 0.0
        %608 = vmatprep.subr.mxu0 0.0
        %609 = vmatpush1.msra.mxu0 0.0
        %610 = vmatprep.subr.mxu0 0.0
        %611 = vmatpush1.msra.mxu0 0.0
        %612 = vmatprep.subr.mxu0 0.0
        %613 = vmatpush1.msra.mxu0 0.0
        %614 = vmatprep.subr.mxu0 0.0
        %615 = vmatpush1.msra.mxu0 0.0
        %616 = vmatprep.subr.mxu0 0.0
        %617 = vmatpush1.msra.mxu0 0.0
        %618 = vmatprep.subr.mxu0 0.0
        %619 = vmatpush1.msra.mxu0 0.0
        %620 = vmatprep.subr.mxu0 0.0
        %621 = vmatpush1.msra.mxu0 0.0
        %622 = vmatprep.subr.mxu0 0.0
        %623 = vmatpush1.msra.mxu0 0.0
        %624 = vmatprep.subr.mxu0 0.0
        %625 = vmatpush1.msra.mxu0 0.0
        %626 = vmatprep.subr.mxu0 0.0
        %627 = vmatpush1.msra.mxu0 0.0
        %628 = vmatprep.subr.mxu0 0.0
        %629 = vmatpush1.msra.mxu0 0.0
        %630 = vmatprep.subr.mxu0 0.0
        %631 = vmatpush1.msra.mxu0 0.0
        %632 = vmatprep.subr.mxu0 0.0
        %633 = vmatpush1.msra.mxu0 0.0
        %634 = vmatprep.subr.mxu0 0.0
        %635 = vmatpush1.msra.mxu0 0.0
        %636 = vmatprep.subr.mxu0 0.0
        %637 = vmatpush1.msra.mxu0 0.0
        %638 = vmatprep.subr.mxu0 0.0
        %639 = vmatpush1.msra.mxu0 0.0
        %640 = vmatprep.subr.mxu0 0.0
        %641 = vmatpush1.msra.mxu0 0.0
        %642 = vmatprep.subr.mxu0 0.0
        %643 = vmatpush1.msra.mxu0 0.0
        %644 = vmatprep.subr.mxu0 0.0
        %645 = vmatpush1.msra.mxu0 0.0
        %646 = vmatprep.subr.mxu0 0.0
        %647 = vmatpush1.msra.mxu0 0.0
        %648 = vmatprep.subr.mxu0 0.0
        %649 = vmatpush1.msra.mxu0 0.0
        %650 = vmatprep.subr.mxu0 0.0
        %651 = vmatpush1.msra.mxu0 0.0
        %652 = vmatprep.subr.mxu0 0.0
        %653 = vmatpush1.msra.mxu0 0.0
        %654 = vmatprep.subr.mxu0 0.0
        %655 = vmatpush1.msra.mxu0 0.0
        %656 = vmatprep.subr.mxu0 0.0
        %657 = vmatpush1.msra.mxu0 0.0
        %658 = vmatprep.subr.mxu0 0.0
        %659 = vmatpush1.msra.mxu0 0.0
        %660 = vmatprep.mubr.f32.mxu0 0.0
        %661 = vmatmul.mubr.f32.gmra.mrb[0].mxu0 %v590
        %v662 = vpop.f32.mrb[0].mxu0
        %v663 = vadd.f32 0.0, %v662
        %v664 = vpop.f32.mrb[0].mxu0
        %v665 = vadd.f32 0.0, %v664
        %666 = vdwg.mxu0
        %v667 = vld [vmem:[#allocation3] sm:$0xf]
        %v670 = vcombine.low %v663, %v665
        %v672 = vunpack.c.l.s4 1983009808
        %v673 = vunpack.c.0.s8 %v672
        %v674 = vlaneseq
        %v675 = vshrl.u32 %v674, 7
        %v676 = vsub.s32 %v673, %v675
        %v677 = vrot.slane %v670, %v676
        %v679 = vadd.f32 %v667, %v677
        %680 = vst [vmem:[#allocation3] sm:$0xf] %v679
        %681 = vrot.lane.b32.xlu0 %v311, 113
        %v682 = vpop.permute.xlu0 %681
        %683 = vrot.lane.b32.xlu0 %v360, 113
        %v684 = vpop.permute.xlu0 %683
        %vm685 = vcmask 924672
        %v686 = vsel %vm685, %v682, %v684
        %v690 = vsel %vm685, %v684, %v682
        %v691 = vmul.f32 %v686, %v345
        %v692 = vmul.f32 %v690, %v346
        %693 = vst [vmem:[#allocation2 + $0x30] sm:$0xf] %v691
        %694 = vst [vmem:[#allocation2 + $0x38] sm:$0xf] %v692
        %696 = vrot.lane.b32.xlu0 %v313, 113
        %v697 = vpop.permute.xlu0 %696
        %699 = vrot.lane.b32.xlu0 %v313, 1
        %v700 = vpop.permute.xlu0 %699
        %v702 = vsel %vm382, %v697, %v700
        %v703 = vmul.f32 %v702, %v355
        %705 = vrot.lane.b32.xlu0 %v703, 112
        %v706 = vpop.permute.xlu0 %705
        %vm708 = vcmask 1044352
        %709 = vst.msk [vmem:[#allocation2 + $0x38] sm:$0xf] %vm708, %v706
        %710 = vrot.lane.b32.xlu0 %v311, 112
        %v711 = vpop.permute.xlu0 %710
        %712 = vrot.lane.b32.xlu0 %v360, 112
        %v713 = vpop.permute.xlu0 %712
        %vm714 = vcmask 916480
        %v715 = vsel %vm714, %v711, %v713
        %v718 = vsel %vm714, %v713, %v711
        %v720 = vrot.slane %v715, 4
        %v721 = vrot.slane %v718, 4
        %724 = vst [vmem:[#allocation2 + $0x30] sm:$0xf0] %v720
        %725 = vst [vmem:[#allocation2 + $0x38] sm:$0xf0] %v721
        %v726 = vrot.slane %v313, 4
        %727 = vrot.lane.b32.xlu0 %v726, 112
        %v728 = vpop.permute.xlu0 %727
        %vm730 = vcmask 1048452
        %731 = vst.msk [vmem:[#allocation2 + $0x38] sm:$0xf0] %vm730, %v728
        %732 = vrot.lane.b32.xlu0 %v311, 111
        %v733 = vpop.permute.xlu0 %732
        %734 = vrot.lane.b32.xlu0 %v360, 111
        %v735 = vpop.permute.xlu0 %734
        %vm736 = vcmask 908288
        %v737 = vsel %vm736, %v733, %v735
        %v741 = vsel %vm736, %v735, %v733
        %v742 = vmul.f32 %v737, %v351
        %v743 = vmul.f32 %v741, %v352
        %744 = vst [vmem:[#allocation2 + $0x40] sm:$0xf] %v742
        %745 = vst [vmem:[#allocation2 + $0x48] sm:$0xf] %v743
        %746 = vrot.lane.b32.xlu0 %v313, 127
        %v747 = vpop.permute.xlu0 %746
        %749 = vrot.lane.b32.xlu0 %v313, 15
        %v750 = vpop.permute.xlu0 %749
        %v752 = vsel %vm412, %v747, %v750
        %v753 = vmul.f32 %v752, %v358
        %755 = vrot.lane.b32.xlu0 %v753, 112
        %v756 = vpop.permute.xlu0 %755
        %758 = vst.msk [vmem:[#allocation2 + $0x48] sm:$0xf] %vm708, %v756
        %s759 = scalar_lea.vmem %s3, 4
        %v760 = vld [vmem:[%s759] sm:$0x3]
        %v761 = vld [vmem:[#allocation2 + $0x30] sm:$0xff]
        %v762 = vld [vmem:[#allocation2 + $0x38] sm:$0xff]
        %v763 = vld [vmem:[#allocation2 + $0x40] sm:$0xf]
        %v764 = vld [vmem:[#allocation2 + $0x48] sm:$0xf]
        %v766 = vsel %vm435, %v760, 0
        %v769 = vsel %vm439, %v763, 0
        %v772 = vsel %vm439, %v764, 0
        %774 = vmatprep.subr.mxu0 %v762
        %775 = vmatpush1.msra.mxu0 %v761
        %776 = vmatprep.subr.mxu0 %v772
        %777 = vmatpush1.msra.mxu0 %v769
        %778 = vmatprep.subr.mxu0 0.0
        %779 = vmatpush1.msra.mxu0 0.0
        %780 = vmatprep.subr.mxu0 0.0
        %781 = vmatpush1.msra.mxu0 0.0
        %782 = vmatprep.subr.mxu0 0.0
        %783 = vmatpush1.msra.mxu0 0.0
        %784 = vmatprep.subr.mxu0 0.0
        %785 = vmatpush1.msra.mxu0 0.0
        %786 = vmatprep.subr.mxu0 0.0
        %787 = vmatpush1.msra.mxu0 0.0
        %788 = vmatprep.subr.mxu0 0.0
        %789 = vmatpush1.msra.mxu0 0.0
        %790 = vmatprep.subr.mxu0 0.0
        %791 = vmatpush1.msra.mxu0 0.0
        %792 = vmatprep.subr.mxu0 0.0
        %793 = vmatpush1.msra.mxu0 0.0
        %794 = vmatprep.subr.mxu0 0.0
        %795 = vmatpush1.msra.mxu0 0.0
        %796 = vmatprep.subr.mxu0 0.0
        %797 = vmatpush1.msra.mxu0 0.0
        %798 = vmatprep.subr.mxu0 0.0
        %799 = vmatpush1.msra.mxu0 0.0
        %800 = vmatprep.subr.mxu0 0.0
        %801 = vmatpush1.msra.mxu0 0.0
        %802 = vmatprep.subr.mxu0 0.0
        %803 = vmatpush1.msra.mxu0 0.0
        %804 = vmatprep.subr.mxu0 0.0
        %805 = vmatpush1.msra.mxu0 0.0
        %806 = vmatprep.subr.mxu0 0.0
        %807 = vmatpush1.msra.mxu0 0.0
        %808 = vmatprep.subr.mxu0 0.0
        %809 = vmatpush1.msra.mxu0 0.0
        %810 = vmatprep.subr.mxu0 0.0
        %811 = vmatpush1.msra.mxu0 0.0
        %812 = vmatprep.subr.mxu0 0.0
        %813 = vmatpush1.msra.mxu0 0.0
        %814 = vmatprep.subr.mxu0 0.0
        %815 = vmatpush1.msra.mxu0 0.0
        %816 = vmatprep.subr.mxu0 0.0
        %817 = vmatpush1.msra.mxu0 0.0
        %818 = vmatprep.subr.mxu0 0.0
        %819 = vmatpush1.msra.mxu0 0.0
        %820 = vmatprep.subr.mxu0 0.0
        %821 = vmatpush1.msra.mxu0 0.0
        %822 = vmatprep.subr.mxu0 0.0
        %823 = vmatpush1.msra.mxu0 0.0
        %824 = vmatprep.subr.mxu0 0.0
        %825 = vmatpush1.msra.mxu0 0.0
        %826 = vmatprep.subr.mxu0 0.0
        %827 = vmatpush1.msra.mxu0 0.0
        %828 = vmatprep.subr.mxu0 0.0
        %829 = vmatpush1.msra.mxu0 0.0
        %830 = vmatprep.subr.mxu0 0.0
        %831 = vmatpush1.msra.mxu0 0.0
        %832 = vmatprep.subr.mxu0 0.0
        %833 = vmatpush1.msra.mxu0 0.0
        %834 = vmatprep.subr.mxu0 0.0
        %835 = vmatpush1.msra.mxu0 0.0
        %836 = vmatprep.subr.mxu0 0.0
        %837 = vmatpush1.msra.mxu0 0.0
        %838 = vmatprep.mubr.f32.mxu0 0.0
        %839 = vmatmul.mubr.f32.gmra.mrb[0].mxu0 %v766
        %v840 = vpop.f32.mrb[0].mxu0
        %v841 = vadd.f32 0.0, %v840
        %v842 = vpop.f32.mrb[0].mxu0
        %v843 = vadd.f32 0.0, %v842
        %844 = vdwg.mxu0
        %v845 = vld [vmem:[#allocation3] sm:$0xf]
        %v848 = vcombine.low %v841, %v843
        %v850 = vunpack.c.l.s4 1983009808
        %v851 = vunpack.c.0.s8 %v850
        %v852 = vlaneseq
        %v853 = vshrl.u32 %v852, 7
        %v854 = vsub.s32 %v851, %v853
        %v855 = vrot.slane %v848, %v854
        %v857 = vadd.f32 %v845, %v855
        %858 = vst [vmem:[#allocation3] sm:$0xf] %v857
        %v859 = vld [vmem:[#allocation3] sm:$0xf]
        %860 = vst [vmem:[%s308] sm:$0xf] %v859
        %s861 = sand.u32 %s151, 1
        %s862 = scalar_lea.sflag [#allocation6], %s861
        %s863 = sand.u32 %s151, 1
        %s864 = smul.addr %s863, 4
        %s865 = scalar_lea.vmem [#allocation10], %s864
        // Predicated region
        $region49: #{tpu_custom_call.1} parent=35 // pred_check
          %p866 = pneg %p161
        $region50: #{tpu_custom_call.1} parent=35 // pred_check_branch
          %868 = sbr.rel (%p866) target = $region52
        $region51: #{tpu_custom_call.1} parent=35 // pred_region
          %s869 = smul.u32 2, %s29
          %s871 = ssub.s32 64, 64
          %872 = vsyncadd %s862, %s871
          %s873 = smul.addr %s28, 2
          %s874 = sadd.s32 %s869, %s873
          %s875 = smul.addr %s874, 32
          %s876 = scalar_lea.hbm %s4, %s875
          %s878 = sshll.u32 %s865, 4
          %s879 = int_to_ptr.vmem [resolvable:$true] %s878
          %881 = dma.vmem_to_hbm [thread:$0]  %s879, 64, %s876, %s862
        $region52: #{tpu_custom_call.1} parent=35 // pred_fallthru
          _
      $region36: #{tpu_custom_call.1} parent=5 // pred_fallthru
        _
      %p882 = scmp.le.s32.totalorder 2, %s19
      // Predicated region
      $region53: #{tpu_custom_call.1} parent=5 // pred_check
        %p883 = pneg %p882
      $region54: #{tpu_custom_call.1} parent=5 // pred_check_branch
        %885 = sbr.rel (%p883) target = $region56
      $region55: #{tpu_custom_call.1} parent=5 // pred_region
        %s886 = ssub.s32 %s19, 2
        // Predicated region
        $region57: #{tpu_custom_call.1} parent=55 // pred_check
          %p887 = pneg %p167
        $region58: #{tpu_custom_call.1} parent=55 // pred_check_branch
          %889 = sbr.rel (%p887) target = $region60
        $region59: #{tpu_custom_call.1} parent=55 // pred_region
          %s890 = sand.u32 %s152, 1
          %s891 = scalar_lea.sflag [#allocation6], %s890
          %s892 = sand.u32 %s152, 1
          %s893 = smul.addr %s892, 4
          %s894 = scalar_lea.vmem [#allocation10], %s893
          %895 = dma.done %s891, 64
        $region60: #{tpu_custom_call.1} parent=55 // pred_fallthru
          _
      $region56: #{tpu_custom_call.1} parent=5 // pred_fallthru
        _
    $region6: #{tpu_custom_call.1} parent=1 // loop_footer
      %s23 = sadd.s32 1, %s19
    $region7: #{tpu_custom_call.1} parent=1 // loop_footer_branch
      %18 = sbr.rel target = $region3
    $region8: #{tpu_custom_call.1} parent=1 // loop_exit
      _
    %896 = vsyncpa [#allocation5], 1
    %s897 = scalar_lea.sflag [#allocation5], 1
    %898 = vsyncpa %s897, 1
    %899 = vsyncpa [#allocation8], 1
    %s900 = scalar_lea.sflag [#allocation8], 1
    %901 = vsyncpa %s900, 1
    %902 = vsyncpa [#allocation6], 1
    %s903 = scalar_lea.sflag [#allocation6], 1
    %904 = vsyncpa %s903, 1

</llo_original>
